<compile_context>
chip_gen: v6e
topology: v6e:2x2x1
jax: 0.10.0
libtpu: 0.0.40
codegen_flags: <defaults>
</compile_context>

<pallas_src>
import math
import jax
import jax.numpy as jnp
from jax.experimental import pallas as pl
from jax.experimental.pallas import tpu as pltpu

NUM_HEADS = 3    # h1, h2 (quadratic), h3 (linear)
NUM_PARAMS = 13  # [q1, q2, s1, t1, b1, q3, q4, s2, t2, b2, q5, t3, b3]
NUM_COEFS = 8    # [a1, c1, d1, a2, c2, d2, c3, d3]

# TB*F element budget: double-buffered (f32 in + 3F f32 out) footprint
# = 32 * TB * F bytes ~= 16 MiB.  Paired with vmem_limit_bytes >= 32 MiB this
# is safe on v5e/v6e/v7x while keeping per-grid-step overhead amortized.
MAX_TILE_ELEMS = 512 * 1024


def ratio_critic_kernel(coef_ref, x_ref, out_ref):
    """coef_ref: SMEM (8,) f32 (scalar-prefetched folded coefficients).
    x_ref: VMEM (TB, F).  out_ref: VMEM (TB, 3F)."""
    a1 = coef_ref[0]
    c1 = coef_ref[1]
    d1 = coef_ref[2]
    a2 = coef_ref[3]
    c2 = coef_ref[4]
    d2 = coef_ref[5]
    c3 = coef_ref[6]
    d3 = coef_ref[7]

    x = x_ref[...]
    x2 = x * x  # shared by both quadratic heads

    h1 = a1 * x2 + c1 * x + d1
    h2 = a2 * x2 + c2 * x + d2
    h3 = c3 * x + d3

    feat = x.shape[-1]
    odt = out_ref.dtype
    if feat % 128 == 0:
        # Lane-dense, 128-aligned slab stores (matches torch.cat order).
        out_ref[:, 0 * feat:1 * feat] = h1.astype(odt)
        out_ref[:, 1 * feat:2 * feat] = h2.astype(odt)
        out_ref[:, 2 * feat:3 * feat] = h3.astype(odt)
    else:
        # Single contiguous store from lane 0; only the 3F%128 tail is masked.
        out_ref[...] = jnp.concatenate([h1, h2, h3], axis=-1).astype(odt)


def fold_coefficients(params):
    """Fold the 13 module scalars into h = a*x^2 + c*x + d per head (plain JAX,
    done once per call, prefetched into SMEM before the grid runs)."""
    q1, q2, s1, t1, b1, q3, q4, s2, t2, b2, q5, t3, b3 = [
        params[i] for i in range(NUM_PARAMS)
    ]
    a1 = s1
    c1 = t1 - 2.0 * s1 * q1
    d1 = s1 * q1 * q1 - t1 * q2 + b1
    a2 = s2
    c2 = t2 - 2.0 * s2 * q3
    d2 = s2 * q3 * q3 - t2 * q4 + b2
    c3 = t3
    d3 = b3 - t3 * q5
    return jnp.stack([a1, c1, d1, a2, c2, d2, c3, d3]).astype(jnp.float32)


def _pick_batch_tile(B, F, dtype):
    """Batch tile from a pure element budget (no row cap), sublane-aligned for
    the dtype, with >= 2 grid steps when B allows (v7x megacore)."""
    itemsize = jnp.dtype(dtype).itemsize
    sub = max(8, 32 // max(itemsize, 1))  # 8 for f32, 16 for bf16
    tb = min(B, max(sub, MAX_TILE_ELEMS // max(F, 1)))
    # Ensure at least 2 grid steps so both v7x TensorCores get work.
    if tb >= B and B > sub:
        half = (B + 1) // 2
        tb = ((half + sub - 1) // sub) * sub
    if tb < B:
        tb = max(sub, (tb // sub) * sub)
    else:
        tb = B  # full-extent block is always a legal block shape
    return tb


def ratio_critic_forward(x, params, out_dtype=None):
    """x: (B, F); params: (13,) f32 packed as
    [q1, q2, s1, t1, b1, q3, q4, s2, t2, b2, q5, t3, b3]."""
    B, F = x.shape
    out_dtype = x.dtype if out_dtype is None else jnp.dtype(out_dtype)
    coefs = fold_coefficients(params)

    tb = _pick_batch_tile(B, F, x.dtype)
    grid = (pl.cdiv(B, tb),)

    in_bytes = x.dtype.itemsize
    out_bytes = jnp.dtype(out_dtype).itemsize
    # Double-buffered pipelined footprint for one grid step.
    footprint = 2 * (tb * F * in_bytes + tb * NUM_HEADS * F * out_bytes)
    vmem_limit = max(32 << 20, int(footprint * 1.25) + (1 << 20))

    bytes_accessed = B * F * in_bytes + B * NUM_HEADS * F * out_bytes
    flops = 11 * B * F  # x*x + 2 quadratic heads (4 ops) + linear head (2 ops)

    return pl.pallas_call(
        ratio_critic_kernel,
        out_shape=jax.ShapeDtypeStruct((B, NUM_HEADS * F), out_dtype),
        grid_spec=pltpu.PrefetchScalarGridSpec(
            num_scalar_prefetch=1,  # folded coefficients -> SMEM before the grid
            grid=grid,
            in_specs=[
                pl.BlockSpec((tb, F), lambda i, coef: (i, 0)),  # x tile
            ],
            out_specs=pl.BlockSpec((tb, NUM_HEADS * F), lambda i, coef: (i, 0)),
        ),
        compiler_params=pltpu.CompilerParams(
            dimension_semantics=("parallel",),
            vmem_limit_bytes=vmem_limit,
        ),
        cost_estimate=pl.CostEstimate(
            flops=flops, transcendentals=0, bytes_accessed=bytes_accessed),
    )(coefs, x)


def xavier_uniform_scalar(key):
    # nn.init.xavier_uniform_ on a (1,1) tensor: bound = sqrt(6/(1+1)) = sqrt(3)
    bound = math.sqrt(3.0)
    return jax.random.uniform(key, (), jnp.float32, minval=-bound, maxval=bound)


def init_params(key):
    keys = jax.random.split(key, NUM_PARAMS)
    vals = jnp.stack([xavier_uniform_scalar(k) for k in keys])
    return vals.astype(jnp.float32)


def reference_forward(x, params):
    """Pure-JAX reference mirroring the PyTorch forward (tre=False)."""
    q1, q2, s1, t1, b1, q3, q4, s2, t2, b2, q5, t3, b3 = [
        params[i] for i in range(NUM_PARAMS)
    ]
    h1 = 1.0 * (x - q1) * (x - q1) * s1 + (x - q2) * t1 + b1
    h2 = (x - q3) * (x - q3) * s2 + (x - q4) * t2 + b2
    h3 = t3 * (x - q5) + b3
    return jnp.concatenate([h1, h2, h3], axis=-1)
    # TODO(synk): tre=True path simply returns h1 (no concat); not exercised here.


if __name__ == "__main__":
    key = jax.random.PRNGKey(0)
    k_param, k_x1, k_x2 = jax.random.split(key, 3)

    params = init_params(k_param)  # (13,) f32

    # Case 1: small F (F % 128 != 0) -> single contiguous concat store path,
    # and B large enough to exercise a 2-step grid.
    B1, F1 = 16, 16
    x1 = jax.random.normal(k_x1, (B1, F1), jnp.float32)
    out1 = jax.block_until_ready(ratio_critic_forward(x1, params))
    ref1 = reference_forward(x1, params)
    assert out1.shape == (B1, NUM_HEADS * F1)
    assert jnp.allclose(out1, ref1, atol=2e-5, rtol=2e-5), "mismatch (F=16)"

    # Case 2: F % 128 == 0 -> lane-dense per-head slab store path.
    B2, F2 = 16, 128
    x2 = jax.random.normal(k_x2, (B2, F2), jnp.float32)
    out2 = jax.block_until_ready(ratio_critic_forward(x2, params))
    ref2 = reference_forward(x2, params)
    assert out2.shape == (B2, NUM_HEADS * F2)
    assert jnp.allclose(out2, ref2, atol=2e-5, rtol=2e-5), "mismatch (F=128)"

    print("KERNEL_OK")
</pallas_src>

<mosaic_0001>
module attributes {stable_mosaic.version = 11 : i64} {
  func.func @ratio_critic_kernel(%arg0: i32, %arg1: memref<8xf32, #tpu.memory_space<smem>>, %arg2: memref<8x16xf32, #tpu.memory_space<vmem>>, %arg3: memref<8x48xf32, #tpu.memory_space<vmem>>) attributes {dimension_semantics = [#tpu.dimension_semantics<parallel>], iteration_bounds = array<i64: 2>, scalar_prefetch = 1 : i64, scratch_operands = 0 : i64, tpu.core_type = #tpu.core_type<tc>, window_params = [{transform_indices = @transform_0, window_bounds = array<i64: 8, 16>}, {transform_indices = @transform_1, window_bounds = array<i64: 8, 48>}]} {
    %c0 = arith.constant 0 : index
    %0 = memref.load %arg1[%c0] : memref<8xf32, #tpu.memory_space<smem>>
    %c1 = arith.constant 1 : index
    %1 = memref.load %arg1[%c1] : memref<8xf32, #tpu.memory_space<smem>>
    %c2 = arith.constant 2 : index
    %2 = memref.load %arg1[%c2] : memref<8xf32, #tpu.memory_space<smem>>
    %c3 = arith.constant 3 : index
    %3 = memref.load %arg1[%c3] : memref<8xf32, #tpu.memory_space<smem>>
    %c4 = arith.constant 4 : index
    %4 = memref.load %arg1[%c4] : memref<8xf32, #tpu.memory_space<smem>>
    %c5 = arith.constant 5 : index
    %5 = memref.load %arg1[%c5] : memref<8xf32, #tpu.memory_space<smem>>
    %c6 = arith.constant 6 : index
    %6 = memref.load %arg1[%c6] : memref<8xf32, #tpu.memory_space<smem>>
    %c7 = arith.constant 7 : index
    %7 = memref.load %arg1[%c7] : memref<8xf32, #tpu.memory_space<smem>>
    %c0_0 = arith.constant 0 : index
    %c0_1 = arith.constant 0 : index
    %8 = vector.load %arg2[%c0_0, %c0_1] : memref<8x16xf32, #tpu.memory_space<vmem>>, vector<8x16xf32>
    %9 = arith.mulf %8, %8 : vector<8x16xf32>
    %10 = vector.broadcast %0 : f32 to vector<8x16xf32>
    %11 = arith.mulf %10, %9 : vector<8x16xf32>
    %12 = vector.broadcast %1 : f32 to vector<8x16xf32>
    %13 = arith.mulf %12, %8 : vector<8x16xf32>
    %14 = arith.addf %11, %13 : vector<8x16xf32>
    %15 = vector.broadcast %2 : f32 to vector<8x16xf32>
    %16 = arith.addf %14, %15 : vector<8x16xf32>
    %17 = vector.broadcast %3 : f32 to vector<8x16xf32>
    %18 = arith.mulf %17, %9 : vector<8x16xf32>
    %19 = vector.broadcast %4 : f32 to vector<8x16xf32>
    %20 = arith.mulf %19, %8 : vector<8x16xf32>
    %21 = arith.addf %18, %20 : vector<8x16xf32>
    %22 = vector.broadcast %5 : f32 to vector<8x16xf32>
    %23 = arith.addf %21, %22 : vector<8x16xf32>
    %24 = vector.broadcast %6 : f32 to vector<8x16xf32>
    %25 = arith.mulf %24, %8 : vector<8x16xf32>
    %26 = vector.broadcast %7 : f32 to vector<8x16xf32>
    %27 = arith.addf %25, %26 : vector<8x16xf32>
    %28 = tpu.concatenate %16, %23, %27 in 1 : vector<8x16xf32>, vector<8x16xf32>, vector<8x16xf32> -> vector<8x48xf32>
    %c0_2 = arith.constant 0 : index
    %c0_3 = arith.constant 0 : index
    %29 = vector.load %arg3[%c0_2, %c0_3] : memref<8x48xf32, #tpu.memory_space<vmem>>, vector<8x48xf32>
    tpu.vector_store %arg3[%c0_2, %c0_3], %28 {strides = array<i32>} : memref<8x48xf32, #tpu.memory_space<vmem>>, vector<8x48xf32>,
    return
  }
  func.func @transform_0(%arg0: i32, %arg1: memref<8xf32, #tpu.memory_space<smem>>) -> (i32, i32) {
    %c0_i32 = arith.constant 0 : i32
    %c0_i32_0 = arith.constant 0 : i32
    return %arg0, %c0_i32 : i32, i32
  }
  func.func @transform_1(%arg0: i32, %arg1: memref<8xf32, #tpu.memory_space<smem>>) -> (i32, i32) {
    %c0_i32 = arith.constant 0 : i32
    %c0_i32_0 = arith.constant 0 : i32
    return %arg0, %c0_i32 : i32, i32
  }
}

</mosaic_0001>

<llo_original>
// kernel: tpu_custom_call.1
$region0: #{tpu_custom_call.1}
  #allocation0 [shape = 'u32[]', space=smem, size = 0x4, offset = 0x4, fixed_abs, tag = 'smem constant byte address 0x4 - core index']
  #allocation1 [shape = 'u32[144,128]{1,0:T(1,128)}', space=vmem, size = 0x12000, scoped, tag = 'internal scratch']
  #allocation2 [shape = 's32[1]{0}', space=sflag, size = 0x4, scoped, tag = 'scoped memory for tpu_custom_call.1']
  #allocation3 [shape = 'u8[512]{0}', space=smem, size = 0x200, scoped, tag = 'prefetched SMEM operand 0']
  %s0 = inlined_call_operand.hbm [shape: f32[8], index: 0, kind: input, shape index: {}]
  %s1 = inlined_call_operand.hbm [shape: f32[16,16], index: 1, kind: input, shape index: {}]
  %s2 = inlined_call_operand.hbm [shape: f32[16,48], index: 2, kind: output, shape index: {}]
  %s3 = sld [smem:[#allocation0]]
  $region41: #{tpu_custom_call.1} parent=0
    _
  %s5 = ssub.s32 1, %s3
  %s6 = scalar_select 0, %s5, %s3
  %8 = dma.hbm_to_smem %s0, 16, [#allocation3], [#allocation2]
  %9 = dma.done [#allocation2], 16
  %10 = sfence
  $region1: #{tpu_custom_call.1} parent=0
    #allocation4 [shape = 'u8[8192]{0}', space=vmem, size = 0x2000, scoped, tag = 'input window, operand 1']
    #allocation5 [shape = 's32[2]{0}', space=sflag, size = 0x8, scoped, tag = 'scoped memory for tpu_custom_call.1']
    #allocation6 [shape = 's32[2]{0}', space=sflag, size = 0x8, scoped, tag = 'scoped memory for tpu_custom_call.1']
    #allocation7 [shape = 'u8[8192]{0}', space=vmem, size = 0x2000, scoped, tag = 'output window, operand 0']
    %11 = vsyncpa [#allocation5], 0
    %s12 = scalar_lea.sflag [#allocation5], 1
    %13 = vsyncpa %s12, 0
    %14 = vsyncpa [#allocation6], 0
    %s15 = scalar_lea.sflag [#allocation6], 1
    %16 = vsyncpa %s15, 0
    loop: start=0, step=1, limit=4
    $region2: #{tpu_custom_call.1} parent=1 // loop_pre_header
      _
    $region3: #{tpu_custom_call.1} parent=1 // loop_header
      %s18 = sphi 0, %s22
      %p19 = scmp.ge.s32.totalorder %s18, 4
      %s28 = sphi 0, %s30
      %s31 = sphi 0, %s28
      %s32 = sphi 0, %s31
      %s48 = sphi 0, %s32
      %s54 = sphi 0, %s56
      %s57 = sphi 0, %s54
      %s58 = sphi 0, %s57
      %s74 = sphi 0, %s58
    $region4: #{tpu_custom_call.1} parent=1 // loop_header_branch
      %21 = sbr.rel (%p19) target = $region8
    $region5: #{tpu_custom_call.1} parent=1 // loop_body
      %s23 = ssub.s32 %s18, 1
      %s24 = ssub.s32 %s18, 2
      %s25 = sadd.s32 %s18, 1
      %s26 = ssub.s32 %s18, %s25
      %p27 = scmp.eq.s32.totalorder %s26, 0
      %s29 = sadd.s32 %s28, 1
      %s30 = scalar_select %p27, %s28, %s29
      %p33 = pneg %p27
      %p34 = scmp.eq.s32.totalorder %s18, 1
      %p35 = por %p33, %p34
      %p36 = scmp.ne.s32.totalorder %s28, %s31
      %p37 = scmp.eq.s32.totalorder %s18, 0
      %p38 = por %p36, %p37
      %p39 = scmp.ne.s32.totalorder %s28, %s31
      %p40 = scmp.eq.s32.totalorder %s23, 1
      %p41 = por %p39, %p40
      %p42 = scmp.ne.s32.totalorder %s31, %s32
      %p43 = scmp.eq.s32.totalorder %s23, 0
      %p44 = por %p42, %p43
      %p45 = scmp.ne.s32.totalorder %s31, %s32
      %p46 = scmp.eq.s32.totalorder %s24, 1
      %p47 = por %p45, %p46
      %p49 = scmp.ne.s32.totalorder %s32, %s48
      %p50 = scmp.eq.s32.totalorder %s24, 0
      %p51 = por %p49, %p50
      %s52 = ssub.s32 %s18, %s25
      %p53 = scmp.eq.s32.totalorder %s52, 0
      %s55 = sadd.s32 %s54, 1
      %s56 = scalar_select %p53, %s54, %s55
      %p59 = pneg %p53
      %p60 = scmp.eq.s32.totalorder %s18, 1
      %p61 = por %p59, %p60
      %p62 = scmp.ne.s32.totalorder %s54, %s57
      %p63 = scmp.eq.s32.totalorder %s18, 0
      %p64 = por %p62, %p63
      %p65 = scmp.ne.s32.totalorder %s54, %s57
      %p66 = scmp.eq.s32.totalorder %s23, 1
      %p67 = por %p65, %p66
      %p68 = scmp.ne.s32.totalorder %s57, %s58
      %p69 = scmp.eq.s32.totalorder %s23, 0
      %p70 = por %p68, %p69
      %p71 = scmp.ne.s32.totalorder %s57, %s58
      %p72 = scmp.eq.s32.totalorder %s24, 1
      %p73 = por %p71, %p72
      %p75 = scmp.ne.s32.totalorder %s58, %s74
      %p76 = scmp.eq.s32.totalorder %s24, 0
      %p77 = por %p75, %p76
      %p78 = scmp.le.s32.totalorder 1, %s18
      %p79 = scmp.lt.s32.totalorder %s18, 3
      %p80 = pnand %p78, %p79
      %p81 = pneg %p80
      // Predicated region
      $region9: #{tpu_custom_call.1} parent=5 // pred_check
        _
      $region10: #{tpu_custom_call.1} parent=5 // pred_check_branch
        %83 = sbr.rel (%p80) target = $region12
      $region11: #{tpu_custom_call.1} parent=5 // pred_region
        %s84 = ssub.s32 %s18, 1
      $region12: #{tpu_custom_call.1} parent=5 // pred_fallthru
        _
      %p85 = scmp.lt.s32.totalorder %s18, 2
      // Predicated region
      $region13: #{tpu_custom_call.1} parent=5 // pred_check
        %p86 = pneg %p85
      $region14: #{tpu_custom_call.1} parent=5 // pred_check_branch
        %88 = sbr.rel (%p86) target = $region16
      $region15: #{tpu_custom_call.1} parent=5 // pred_region
        // Predicated region
        $region17: #{tpu_custom_call.1} parent=15 // pred_check
          %p89 = pneg %p38
        $region18: #{tpu_custom_call.1} parent=15 // pred_check_branch
          %91 = sbr.rel (%p89) target = $region20
        $region19: #{tpu_custom_call.1} parent=15 // pred_region
          %s92 = sand.u32 %s28, 1
          %s93 = scalar_lea.sflag [#allocation5], %s92
          %s94 = sand.u32 %s28, 1
          %s95 = smul.addr %s94, 8
          %s96 = scalar_lea.vmem [#allocation4], %s95
          %s98 = ssub.s32 128, 128
          %99 = vsyncadd %s93, %s98
          %s100 = smul.addr %s18, 128
          %s101 = scalar_lea.hbm %s1, %s100
          %s103 = sshll.u32 %s96, 4
          %s104 = int_to_ptr.vmem [resolvable:$true] %s103
          %106 = dma.hbm_to_vmem [thread:$0]  %s101, 128, %s104, %s93
        $region20: #{tpu_custom_call.1} parent=15 // pred_fallthru
          _
      $region16: #{tpu_custom_call.1} parent=5 // pred_fallthru
        _
      %p107 = scmp.le.s32.totalorder 1, %s18
      %p108 = scmp.lt.s32.totalorder %s18, 3
      %p109 = pnand %p107, %p108
      %p110 = pneg %p109
      // Predicated region
      $region21: #{tpu_custom_call.1} parent=5 // pred_check
        _
      $region22: #{tpu_custom_call.1} parent=5 // pred_check_branch
        %112 = sbr.rel (%p109) target = $region24
      $region23: #{tpu_custom_call.1} parent=5 // pred_region
        %s113 = ssub.s32 %s18, 1
        %s114 = sand.u32 %s31, 1
        %s115 = scalar_lea.sflag [#allocation5], %s114
        %s116 = sand.u32 %s31, 1
        %s117 = smul.addr %s116, 8
        %s118 = scalar_lea.vmem [#allocation4], %s117
        // Predicated region
        $region25: #{tpu_custom_call.1} parent=23 // pred_check
          %p119 = pneg %p44
        $region26: #{tpu_custom_call.1} parent=23 // pred_check_branch
          %121 = sbr.rel (%p119) target = $region28
        $region27: #{tpu_custom_call.1} parent=23 // pred_region
          %122 = dma.done %s115, 128
        $region28: #{tpu_custom_call.1} parent=23 // pred_fallthru
          _
        %s123 = sand.u32 %s31, 1
        %s124 = scalar_lea.sflag [#allocation5], %s123
        %s125 = sand.u32 %s31, 1
        %s126 = smul.addr %s125, 8
        %s127 = scalar_lea.vmem [#allocation4], %s126
        %p128 = pneg %p44
        %p129 = pneg %p41
        %p130 = pneg %p70
        %p131 = pneg %p67
        %s132 = sand.u32 %s57, 1
        %s133 = scalar_lea.sflag [#allocation6], %s132
        %s134 = sand.u32 %s57, 1
        %s135 = smul.addr %s134, 8
        %s136 = scalar_lea.vmem [#allocation7], %s135
        %s137 = sld [smem:[#allocation3]]
        %s138 = sld [smem:[#allocation3 + $0x1]]
        %s139 = sld [smem:[#allocation3 + $0x2]]
        %s140 = sld [smem:[#allocation3 + $0x3]]
        %s141 = sld [smem:[#allocation3 + $0x4]]
        %s142 = sld [smem:[#allocation3 + $0x5]]
        %s143 = sld [smem:[#allocation3 + $0x6]]
        %s144 = sld [smem:[#allocation3 + $0x7]]
        %v145 = vld [vmem:[%s118] sm:$0xff]
        %v146 = vmul.f32 %v145, %v145
        %v147 = vstv %s137
        %v148 = vmul.f32 %v147, %v146
        %v149 = vstv %s138
        %v150 = vmul.f32 %v149, %v145
        %v151 = vadd.f32 %v148, %v150
        %v152 = vstv %s139
        %v153 = vadd.f32 %v151, %v152
        %v154 = vstv %s140
        %v155 = vmul.f32 %v154, %v146
        %v156 = vstv %s141
        %v157 = vmul.f32 %v156, %v145
        %v158 = vadd.f32 %v155, %v157
        %v159 = vstv %s142
        %v160 = vadd.f32 %v158, %v159
        %v161 = vstv %s143
        %v162 = vmul.f32 %v161, %v145
        %v163 = vstv %s144
        %v164 = vadd.f32 %v162, %v163
        %166 = vrot.lane.b32.xlu0 %v160, 16
        %v167 = vpop.permute.xlu0 %166
        %170 = vrot.lane.b32.xlu0 %v164, 32
        %v171 = vpop.permute.xlu0 %170
        %vm173 = vcmask 130048
        %v174 = vsel %vm173, %v153, %v167
        %vm175 = vcmask 261120
        %v176 = vsel %vm175, %v174, %v171
        %vm177 = vcmask 392192
        %178 = vst.msk [vmem:[%s136] sm:$0xff] %vm177, %v176
        %s179 = sand.u32 %s57, 1
        %s180 = scalar_lea.sflag [#allocation6], %s179
        %s181 = sand.u32 %s57, 1
        %s182 = smul.addr %s181, 8
        %s183 = scalar_lea.vmem [#allocation7], %s182
        // Predicated region
        $region29: #{tpu_custom_call.1} parent=23 // pred_check
          %p184 = pneg %p67
        $region30: #{tpu_custom_call.1} parent=23 // pred_check_branch
          %186 = sbr.rel (%p184) target = $region32
        $region31: #{tpu_custom_call.1} parent=23 // pred_region
          %s188 = ssub.s32 128, 128
          %189 = vsyncadd %s180, %s188
          %s190 = smul.addr %s23, 128
          %s191 = scalar_lea.hbm %s2, %s190
          %s193 = sshll.u32 %s183, 4
          %s194 = int_to_ptr.vmem [resolvable:$true] %s193
          %196 = dma.vmem_to_hbm [thread:$0]  %s194, 128, %s191, %s180
        $region32: #{tpu_custom_call.1} parent=23 // pred_fallthru
          _
      $region24: #{tpu_custom_call.1} parent=5 // pred_fallthru
        _
      %p197 = scmp.le.s32.totalorder 2, %s18
      // Predicated region
      $region33: #{tpu_custom_call.1} parent=5 // pred_check
        %p198 = pneg %p197
      $region34: #{tpu_custom_call.1} parent=5 // pred_check_branch
        %200 = sbr.rel (%p198) target = $region36
      $region35: #{tpu_custom_call.1} parent=5 // pred_region
        %s201 = ssub.s32 %s18, 2
        // Predicated region
        $region37: #{tpu_custom_call.1} parent=35 // pred_check
          %p202 = pneg %p73
        $region38: #{tpu_custom_call.1} parent=35 // pred_check_branch
          %204 = sbr.rel (%p202) target = $region40
        $region39: #{tpu_custom_call.1} parent=35 // pred_region
          %s205 = sand.u32 %s58, 1
          %s206 = scalar_lea.sflag [#allocation6], %s205
          %s207 = sand.u32 %s58, 1
          %s208 = smul.addr %s207, 8
          %s209 = scalar_lea.vmem [#allocation7], %s208
          %210 = dma.done %s206, 128
        $region40: #{tpu_custom_call.1} parent=35 // pred_fallthru
          _
      $region36: #{tpu_custom_call.1} parent=5 // pred_fallthru
        _
    $region6: #{tpu_custom_call.1} parent=1 // loop_footer
      %s22 = sadd.s32 1, %s18
    $region7: #{tpu_custom_call.1} parent=1 // loop_footer_branch
      %17 = sbr.rel target = $region3
    $region8: #{tpu_custom_call.1} parent=1 // loop_exit
      _
    %211 = vsyncpa [#allocation5], 1
    %s212 = scalar_lea.sflag [#allocation5], 1
    %213 = vsyncpa %s212, 1
    %214 = vsyncpa [#allocation6], 1
    %s215 = scalar_lea.sflag [#allocation6], 1
    %216 = vsyncpa %s215, 1

</llo_original>
